<compile_context>
chip_gen: v5e
topology: v5e:2x2
jax: 0.10.0
libtpu: 0.0.40
codegen_flags: <defaults>
</compile_context>

<pallas_src>
import jax
import jax.numpy as jnp
from jax.experimental import pallas as pl
from jax.experimental.pallas import tpu as pltpu


def _spatial_attention_kernel(scale_ref, b_ref, x_ref, o_ref):
    # scale_ref : (1,) SMEM scalar = conv_weight / C
    # b_ref     : (1,) SMEM scalar = conv_bias
    # x_ref/o_ref : (C, TS) VMEM tiles (batch + spatial-tile axes handled by grid)
    x = x_ref[...]
    # Channel reduction in f32 for accuracy; conv weight folded into the scale.
    csum = jnp.sum(x.astype(jnp.float32), axis=0, keepdims=True)       # (1, TS)
    att = jax.nn.sigmoid(csum * scale_ref[0] + b_ref[0])               # (1, TS) f32
    # Keep the dominant C x TS multiply in the input dtype (no whole-tile upcast).
    o_ref[...] = (x * att.astype(x.dtype)).astype(o_ref.dtype)


def _choose_spatial_tile(s_lanes, channels, itemsize,
                         target=2048, vmem_budget_bytes=8 * 1024 * 1024):
    """Largest multiple of 128 <= target whose double-buffered in+out tiles
    (2 bufs x (in + out) = 4 * C * TS * itemsize) stay within a budget that is
    safe under default scoped-VMEM limits on v5e/v6e/v7x."""
    max_ts = vmem_budget_bytes // max(1, 4 * channels * itemsize)
    ts = min(s_lanes, target, max(128, (max_ts // 128) * 128))
    ts = max(128, (ts // 128) * 128)
    return ts


def spatial_attention(x, weight, bias):
    """x: (N, C, D, H, W); weight: (1, 1, 1, 1, 1); bias: (1,)."""
    N, C, D, H, W = x.shape
    S = D * H * W
    itemsize = jnp.dtype(x.dtype).itemsize

    # Lane-dense tile of the flattened spatial axis.
    s128 = ((S + 127) // 128) * 128
    ts = _choose_spatial_tile(s128, C, itemsize)
    s_pad = ((S + ts - 1) // ts) * ts
    n_s_tiles = s_pad // ts

    x_flat = x.reshape(N, C, S)
    if s_pad != S:
        # Pad the spatial axis; padded lanes are sliced off after the call and
        # do not affect the channel mean of valid positions.
        x_flat = jnp.pad(x_flat, ((0, 0), (0, 0), (0, s_pad - S)))

    # Fold the 1x1x1 conv weight into the channel reduction: w * mean = sum * (w/C).
    scale = (weight.reshape(1).astype(jnp.float32) / jnp.float32(C))
    b = bias.reshape(1).astype(jnp.float32)

    cost = pl.CostEstimate(
        flops=3 * N * C * S,
        transcendentals=N * S,
        bytes_accessed=2 * N * C * S * itemsize,
    )

    out_flat = pl.pallas_call(
        _spatial_attention_kernel,
        out_shape=jax.ShapeDtypeStruct((N, C, s_pad), x.dtype),
        grid=(N, n_s_tiles),
        in_specs=[
            pl.BlockSpec(memory_space=pltpu.MemorySpace.SMEM),    # folded conv weight
            pl.BlockSpec(memory_space=pltpu.MemorySpace.SMEM),    # conv bias
            pl.BlockSpec((None, C, ts), lambda n, s: (n, 0, s)),  # x tile (C, TS)
        ],
        out_specs=pl.BlockSpec((None, C, ts), lambda n, s: (n, 0, s)),
        compiler_params=pltpu.CompilerParams(
            dimension_semantics=("parallel", "parallel"),
        ),
        cost_estimate=cost,
    )(scale, b, x_flat)

    return out_flat[:, :, :S].reshape(N, C, D, H, W)


if __name__ == "__main__":
    key = jax.random.PRNGKey(0)
    k_x, k_w, k_b = jax.random.split(key, 3)

    # Small volumetric shapes: N, C, D, H, W.
    N, C, D, H, W = 2, 4, 8, 8, 16
    x = jax.random.normal(k_x, (N, C, D, H, W), dtype=jnp.float32)

    # Deterministic params for the 1x1x1 conv the reference forward executes
    # (it consumes the 1-channel mean, so scalar weight + scalar bias).
    weight = 0.1 * jax.random.normal(k_w, (1, 1, 1, 1, 1), dtype=jnp.float32)
    bias = 0.1 * jax.random.normal(k_b, (1,), dtype=jnp.float32)

    out = spatial_attention(x, weight, bias)
    jax.block_until_ready(out)

    # Pure-JAX reference.
    avg = jnp.mean(x, axis=1, keepdims=True)
    att = jax.nn.sigmoid(weight.reshape(()) * avg + bias.reshape(()))
    ref = x * att
    assert out.shape == x.shape and out.dtype == x.dtype
    assert jnp.allclose(out, ref, atol=1e-5, rtol=1e-5)

    print("KERNEL_OK")
</pallas_src>

<mosaic_0001>
module attributes {stable_mosaic.version = 11 : i64} {
  func.func @_spatial_attention_kernel(%arg0: i32, %arg1: i32, %arg2: memref<1xf32, #tpu.memory_space<smem>>, %arg3: memref<1xf32, #tpu.memory_space<smem>>, %arg4: memref<1x4x1024xf32, #tpu.memory_space<vmem>>, %arg5: memref<1x4x1024xf32, #tpu.memory_space<vmem>>) attributes {dimension_semantics = [#tpu.dimension_semantics<parallel>, #tpu.dimension_semantics<parallel>], iteration_bounds = array<i64: 2, 1>, scalar_prefetch = 0 : i64, scratch_operands = 0 : i64, tpu.core_type = #tpu.core_type<tc>, window_params = [{transform_indices = @transform_0, window_bounds = array<i64: 1>}, {transform_indices = @transform_1, window_bounds = array<i64: 1>}, {transform_indices = @transform_2, window_bounds = array<i64: 1, 4, 1024>}, {transform_indices = @transform_3, window_bounds = array<i64: 1, 4, 1024>}]} {
    %c0 = arith.constant 0 : index
    %c0_0 = arith.constant 0 : index
    %c0_1 = arith.constant 0 : index
    %0 = vector.load %arg4[%c0, %c0_0, %c0_1] : memref<1x4x1024xf32, #tpu.memory_space<vmem>>, vector<1x4x1024xf32>
    %1 = vector.shape_cast %0 : vector<1x4x1024xf32> to vector<4x1024xf32>
    %cst = arith.constant dense<0.000000e+00> : vector<1024xf32>
    %2 = vector.multi_reduction <add>, %1, %cst [0] : vector<4x1024xf32> to vector<1024xf32>
    %3 = vector.shape_cast %2 : vector<1024xf32> to vector<1x1024xf32>
    %c0_2 = arith.constant 0 : index
    %4 = memref.load %arg2[%c0_2] : memref<1xf32, #tpu.memory_space<smem>>
    %5 = vector.broadcast %4 : f32 to vector<1x1024xf32>
    %6 = arith.mulf %3, %5 : vector<1x1024xf32>
    %c0_3 = arith.constant 0 : index
    %7 = memref.load %arg3[%c0_3] : memref<1xf32, #tpu.memory_space<smem>>
    %8 = vector.broadcast %7 : f32 to vector<1x1024xf32>
    %9 = arith.addf %6, %8 : vector<1x1024xf32>
    %10 = arith.negf %9 : vector<1x1024xf32>
    %11 = math.exp %10 : vector<1x1024xf32>
    %cst_4 = arith.constant 1.000000e+00 : f32
    %12 = vector.broadcast %cst_4 : f32 to vector<1x1024xf32>
    %13 = arith.addf %12, %11 : vector<1x1024xf32>
    %14 = arith.divf %12, %13 : vector<1x1024xf32>
    %15 = vector.broadcast %14 : vector<1x1024xf32> to vector<4x1024xf32>
    %16 = arith.mulf %1, %15 : vector<4x1024xf32>
    %c0_5 = arith.constant 0 : index
    %c0_6 = arith.constant 0 : index
    %c0_7 = arith.constant 0 : index
    %17 = vector.load %arg5[%c0_5, %c0_6, %c0_7] : memref<1x4x1024xf32, #tpu.memory_space<vmem>>, vector<1x4x1024xf32>
    %18 = vector.shape_cast %17 : vector<1x4x1024xf32> to vector<4x1024xf32>
    %19 = vector.shape_cast %16 : vector<4x1024xf32> to vector<1x4x1024xf32>
    tpu.vector_store %arg5[%c0_5, %c0_6, %c0_7], %19 {strides = array<i32>} : memref<1x4x1024xf32, #tpu.memory_space<vmem>>, vector<1x4x1024xf32>,
    return
  }
  func.func @transform_0(%arg0: i32, %arg1: i32) -> i32 {
    %c0_i32 = arith.constant 0 : i32
    %c0_i32_0 = arith.constant 0 : i32
    return %c0_i32 : i32
  }
  func.func @transform_1(%arg0: i32, %arg1: i32) -> i32 {
    %c0_i32 = arith.constant 0 : i32
    %c0_i32_0 = arith.constant 0 : i32
    return %c0_i32 : i32
  }
  func.func @transform_2(%arg0: i32, %arg1: i32) -> (i32, i32, i32) {
    %c0_i32 = arith.constant 0 : i32
    %c0_i32_0 = arith.constant 0 : i32
    return %arg0, %c0_i32, %arg1 : i32, i32, i32
  }
  func.func @transform_3(%arg0: i32, %arg1: i32) -> (i32, i32, i32) {
    %c0_i32 = arith.constant 0 : i32
    %c0_i32_0 = arith.constant 0 : i32
    return %arg0, %c0_i32, %arg1 : i32, i32, i32
  }
}

</mosaic_0001>

<llo_original>
// kernel: tpu_custom_call.1
$region0: #{tpu_custom_call.1}
  #allocation0 [shape = 'u32[]', space=smem, size = 0x4, offset = 0x4, fixed_abs, tag = 'smem constant byte address 0x4 - core index']
  #allocation1 [shape = 'u32[72,128]{1,0:T(1,128)}', space=vmem, size = 0x9000, scoped, tag = 'internal scratch']
  #allocation2 [shape = 'f32[1]{0:T(128)S(6)}', space=smem, size = 0x200, scoped, tag = 'scoped memory for tpu_custom_call.1']
  #allocation3 [shape = 'f32[1]{0:T(128)S(6)}', space=smem, size = 0x200, scoped, tag = 'scoped memory for tpu_custom_call.1']
  %s0 = inlined_call_operand.<no memory space> [shape: f32[1], index: 0, kind: input, shape index: {}]
  %s1 = inlined_call_operand.<no memory space> [shape: f32[1], index: 1, kind: input, shape index: {}]
  %s2 = inlined_call_operand.hbm [shape: f32[2,4,1024], index: 2, kind: input, shape index: {}]
  %s3 = inlined_call_operand.hbm [shape: f32[2,4,1024], index: 3, kind: output, shape index: {}]
  %s4 = sld [smem:[#allocation0]]
  $region49: #{tpu_custom_call.1} parent=0
    _
  %s6 = ssub.s32 1, %s4
  %s7 = scalar_select 0, %s6, %s4
  %8 = sst [smem:[#allocation2]] %s0
  %9 = sst [smem:[#allocation3]] %s1
  $region1: #{tpu_custom_call.1} parent=0
    #allocation4 [shape = 'u8[32768]{0}', space=vmem, size = 0x8000, scoped, tag = 'input window, operand 2']
    #allocation5 [shape = 's32[2]{0}', space=sflag, size = 0x8, scoped, tag = 'scoped memory for tpu_custom_call.1']
    #allocation6 [shape = 's32[2]{0}', space=sflag, size = 0x8, scoped, tag = 'scoped memory for tpu_custom_call.1']
    #allocation7 [shape = 'u8[32768]{0}', space=vmem, size = 0x8000, scoped, tag = 'output window, operand 0']
    %10 = vsyncpa [#allocation5], 0
    %s11 = scalar_lea.sflag [#allocation5], 1
    %12 = vsyncpa %s11, 0
    %13 = vsyncpa [#allocation6], 0
    %s14 = scalar_lea.sflag [#allocation6], 1
    %15 = vsyncpa %s14, 0
    loop: start=0, step=1, limit=4
    $region2: #{tpu_custom_call.1} parent=1 // loop_pre_header
      _
    $region3: #{tpu_custom_call.1} parent=1 // loop_header
      %s17 = sphi 0, %s21
      %p18 = scmp.ge.s32.totalorder %s17, 4
      %s24 = sphi 0, %s36
      %s25 = sphi 0, %s32
      %s26 = sphi 0, %s24
      %s27 = sphi 0, %s25
      %s28 = sphi 0, %s26
      %s29 = sphi 0, %s27
      %s37 = sphi 0, %s37
      %s39 = sphi 0, %s37
      %s40 = sphi 0, %s39
      %s54 = sphi 0, %s40
      %s58 = sphi 0, %s58
      %s60 = sphi 0, %s58
      %s61 = sphi 0, %s60
      %s75 = sphi 0, %s61
      %s83 = sphi 0, %s85
      %s86 = sphi 0, %s83
      %s87 = sphi 0, %s86
      %s103 = sphi 0, %s87
      %s111 = sphi 0, %s113
      %s114 = sphi 0, %s111
      %s115 = sphi 0, %s114
      %s131 = sphi 0, %s115
    $region4: #{tpu_custom_call.1} parent=1 // loop_header_branch
      %20 = sbr.rel (%p18) target = $region8
    $region5: #{tpu_custom_call.1} parent=1 // loop_body
      %s22 = ssub.s32 %s17, 1
      %s23 = ssub.s32 %s17, 2
      %s30 = sadd.s32 1, %s25
      %p31 = scmp.ge.s32.totalorder %s30, 1
      %s32 = scalar_select %p31, 0, %s30
      %s33 = sadd.s32 1, %s24
      %s34 = scalar_select %p31, %s33, %s24
      %p35 = scmp.ge.s32.totalorder %s34, 2
      %s36 = scalar_select %p35, 0, %s34
      %s38 = sadd.s32 %s37, 1
      %p41 = scmp.eq.s32.totalorder %s17, 1
      %p42 = scmp.ne.s32.totalorder %s37, %s39
      %p43 = scmp.eq.s32.totalorder %s17, 0
      %p44 = por %p42, %p43
      %p45 = scmp.ne.s32.totalorder %s37, %s39
      %p46 = scmp.eq.s32.totalorder %s22, 1
      %p47 = por %p45, %p46
      %p48 = scmp.ne.s32.totalorder %s39, %s40
      %p49 = scmp.eq.s32.totalorder %s22, 0
      %p50 = por %p48, %p49
      %p51 = scmp.ne.s32.totalorder %s39, %s40
      %p52 = scmp.eq.s32.totalorder %s23, 1
      %p53 = por %p51, %p52
      %p55 = scmp.ne.s32.totalorder %s40, %s54
      %p56 = scmp.eq.s32.totalorder %s23, 0
      %p57 = por %p55, %p56
      %s59 = sadd.s32 %s58, 1
      %p62 = scmp.eq.s32.totalorder %s17, 1
      %p63 = scmp.ne.s32.totalorder %s58, %s60
      %p64 = scmp.eq.s32.totalorder %s17, 0
      %p65 = por %p63, %p64
      %p66 = scmp.ne.s32.totalorder %s58, %s60
      %p67 = scmp.eq.s32.totalorder %s22, 1
      %p68 = por %p66, %p67
      %p69 = scmp.ne.s32.totalorder %s60, %s61
      %p70 = scmp.eq.s32.totalorder %s22, 0
      %p71 = por %p69, %p70
      %p72 = scmp.ne.s32.totalorder %s60, %s61
      %p73 = scmp.eq.s32.totalorder %s23, 1
      %p74 = por %p72, %p73
      %p76 = scmp.ne.s32.totalorder %s61, %s75
      %p77 = scmp.eq.s32.totalorder %s23, 0
      %p78 = por %p76, %p77
      %s79 = ssub.s32 %s24, %s36
      %s80 = ssub.s32 %s25, %s32
      %s81 = sor.u32 %s79, %s80
      %p82 = scmp.eq.s32.totalorder %s81, 0
      %s84 = sadd.s32 %s83, 1
      %s85 = scalar_select %p82, %s83, %s84
      %p88 = pneg %p82
      %p89 = scmp.eq.s32.totalorder %s17, 1
      %p90 = por %p88, %p89
      %p91 = scmp.ne.s32.totalorder %s83, %s86
      %p92 = scmp.eq.s32.totalorder %s17, 0
      %p93 = por %p91, %p92
      %p94 = scmp.ne.s32.totalorder %s83, %s86
      %p95 = scmp.eq.s32.totalorder %s22, 1
      %p96 = por %p94, %p95
      %p97 = scmp.ne.s32.totalorder %s86, %s87
      %p98 = scmp.eq.s32.totalorder %s22, 0
      %p99 = por %p97, %p98
      %p100 = scmp.ne.s32.totalorder %s86, %s87
      %p101 = scmp.eq.s32.totalorder %s23, 1
      %p102 = por %p100, %p101
      %p104 = scmp.ne.s32.totalorder %s87, %s103
      %p105 = scmp.eq.s32.totalorder %s23, 0
      %p106 = por %p104, %p105
      %s107 = ssub.s32 %s24, %s36
      %s108 = ssub.s32 %s25, %s32
      %s109 = sor.u32 %s107, %s108
      %p110 = scmp.eq.s32.totalorder %s109, 0
      %s112 = sadd.s32 %s111, 1
      %s113 = scalar_select %p110, %s111, %s112
      %p116 = pneg %p110
      %p117 = scmp.eq.s32.totalorder %s17, 1
      %p118 = por %p116, %p117
      %p119 = scmp.ne.s32.totalorder %s111, %s114
      %p120 = scmp.eq.s32.totalorder %s17, 0
      %p121 = por %p119, %p120
      %p122 = scmp.ne.s32.totalorder %s111, %s114
      %p123 = scmp.eq.s32.totalorder %s22, 1
      %p124 = por %p122, %p123
      %p125 = scmp.ne.s32.totalorder %s114, %s115
      %p126 = scmp.eq.s32.totalorder %s22, 0
      %p127 = por %p125, %p126
      %p128 = scmp.ne.s32.totalorder %s114, %s115
      %p129 = scmp.eq.s32.totalorder %s23, 1
      %p130 = por %p128, %p129
      %p132 = scmp.ne.s32.totalorder %s115, %s131
      %p133 = scmp.eq.s32.totalorder %s23, 0
      %p134 = por %p132, %p133
      %p135 = scmp.le.s32.totalorder 1, %s17
      %p136 = scmp.lt.s32.totalorder %s17, 3
      %p137 = pnand %p135, %p136
      %p138 = pneg %p137
      // Predicated region
      $region9: #{tpu_custom_call.1} parent=5 // pred_check
        _
      $region10: #{tpu_custom_call.1} parent=5 // pred_check_branch
        %140 = sbr.rel (%p137) target = $region12
      $region11: #{tpu_custom_call.1} parent=5 // pred_region
        %s141 = ssub.s32 %s17, 1
        // Predicated region
        $region13: #{tpu_custom_call.1} parent=11 // pred_check
          %p142 = pneg %p50
        $region14: #{tpu_custom_call.1} parent=11 // pred_check_branch
          %144 = sbr.rel (%p142) target = $region16
        $region15: #{tpu_custom_call.1} parent=11 // pred_region
          _
        $region16: #{tpu_custom_call.1} parent=11 // pred_fallthru
          _
        // Predicated region
        $region17: #{tpu_custom_call.1} parent=11 // pred_check
          %p145 = pneg %p71
        $region18: #{tpu_custom_call.1} parent=11 // pred_check_branch
          %147 = sbr.rel (%p145) target = $region20
        $region19: #{tpu_custom_call.1} parent=11 // pred_region
          _
        $region20: #{tpu_custom_call.1} parent=11 // pred_fallthru
          _
      $region12: #{tpu_custom_call.1} parent=5 // pred_fallthru
        _
      %p148 = scmp.lt.s32.totalorder %s17, 2
      // Predicated region
      $region21: #{tpu_custom_call.1} parent=5 // pred_check
        %p149 = pneg %p148
      $region22: #{tpu_custom_call.1} parent=5 // pred_check_branch
        %151 = sbr.rel (%p149) target = $region24
      $region23: #{tpu_custom_call.1} parent=5 // pred_region
        // Predicated region
        $region25: #{tpu_custom_call.1} parent=23 // pred_check
          %p152 = pneg %p93
        $region26: #{tpu_custom_call.1} parent=23 // pred_check_branch
          %154 = sbr.rel (%p152) target = $region28
        $region27: #{tpu_custom_call.1} parent=23 // pred_region
          %s155 = sand.u32 %s83, 1
          %s156 = scalar_lea.sflag [#allocation5], %s155
          %s157 = sand.u32 %s83, 1
          %s158 = smul.addr %s157, 32
          %s159 = scalar_lea.vmem [#allocation4], %s158
          %s160 = smul.u32 8, %s25
          %162 = vsyncadd %s156, 0
          %s163 = smul.addr %s24, 8
          %s164 = sadd.s32 %s160, %s163
          %s165 = smul.addr %s164, 4
          %s166 = scalar_lea.hbm %s2, %s165
          %s168 = sshll.u32 %s166, 4
          %s169 = int_to_ptr.hbm [resolvable:$true] %s168
          %s170 = sshll.u32 %s159, 4
          %s171 = int_to_ptr.vmem [resolvable:$true] %s170
          %173 = dma.hbm_to_vmem [thread:$0]  %s169, 512, %s171, %s156
        $region28: #{tpu_custom_call.1} parent=23 // pred_fallthru
          _
      $region24: #{tpu_custom_call.1} parent=5 // pred_fallthru
        _
      %p174 = scmp.le.s32.totalorder 1, %s17
      %p175 = scmp.lt.s32.totalorder %s17, 3
      %p176 = pnand %p174, %p175
      %p177 = pneg %p176
      // Predicated region
      $region29: #{tpu_custom_call.1} parent=5 // pred_check
        _
      $region30: #{tpu_custom_call.1} parent=5 // pred_check_branch
        %179 = sbr.rel (%p176) target = $region32
      $region31: #{tpu_custom_call.1} parent=5 // pred_region
        %s180 = ssub.s32 %s17, 1
        %s181 = sand.u32 %s86, 1
        %s182 = scalar_lea.sflag [#allocation5], %s181
        %s183 = sand.u32 %s86, 1
        %s184 = smul.addr %s183, 32
        %s185 = scalar_lea.vmem [#allocation4], %s184
        // Predicated region
        $region33: #{tpu_custom_call.1} parent=31 // pred_check
          %p186 = pneg %p99
        $region34: #{tpu_custom_call.1} parent=31 // pred_check_branch
          %188 = sbr.rel (%p186) target = $region36
        $region35: #{tpu_custom_call.1} parent=31 // pred_region
          %190 = dma.done %s182, 512
        $region36: #{tpu_custom_call.1} parent=31 // pred_fallthru
          _
        %p191 = pneg %p50
        %p192 = pneg %p47
        %p193 = pneg %p71
        %p194 = pneg %p68
        %s195 = sand.u32 %s86, 1
        %s196 = scalar_lea.sflag [#allocation5], %s195
        %s197 = sand.u32 %s86, 1
        %s198 = smul.addr %s197, 32
        %s199 = scalar_lea.vmem [#allocation4], %s198
        %p200 = pneg %p99
        %p201 = pneg %p96
        %p202 = pneg %p127
        %p203 = pneg %p124
        %s204 = sand.u32 %s114, 1
        %s205 = scalar_lea.sflag [#allocation6], %s204
        %s206 = sand.u32 %s114, 1
        %s207 = smul.addr %s206, 32
        %s208 = scalar_lea.vmem [#allocation7], %s207
        %s209 = smul.u32 8, %s27
        %s210 = smul.u32 8, %s27
        %v211 = vld [vmem:[%s185] sm:$0xff]
        %v212 = vld [vmem:[%s185 + $0x8] sm:$0xff]
        %v213 = vld [vmem:[%s185 + $0x10] sm:$0xff]
        %v214 = vld [vmem:[%s185 + $0x18] sm:$0xff]
        %219 = vst [vmem:[#allocation1] ss:$2 sm:$0xff] %v211
        %s220 = scalar_lea.vmem [#allocation1], 16
        %221 = vst [vmem:[%s220] ss:$2 sm:$0xff] %v212
        %s222 = scalar_lea.vmem [#allocation1], 32
        %223 = vst [vmem:[%s222] ss:$2 sm:$0xff] %v213
        %s224 = scalar_lea.vmem [#allocation1], 48
        %225 = vst [vmem:[%s224] ss:$2 sm:$0xff] %v214
        %v226 = vld.sshfl [vmem:[#allocation1] sm:$0xff pattern:$0x75316420]
        %v227 = vld.sshfl [vmem:[#allocation1 + $0x8] sm:$0xff pattern:$0x75316420]
        %v228 = vld.sshfl [vmem:[#allocation1 + $0x10] sm:$0xff pattern:$0x75316420]
        %v229 = vld.sshfl [vmem:[#allocation1 + $0x18] sm:$0xff pattern:$0x75316420]
        %v230 = vld.sshfl [vmem:[#allocation1 + $0x20] sm:$0xff pattern:$0x75316420]
        %v231 = vld.sshfl [vmem:[#allocation1 + $0x28] sm:$0xff pattern:$0x75316420]
        %v232 = vld.sshfl [vmem:[#allocation1 + $0x30] sm:$0xff pattern:$0x75316420]
        %v233 = vld.sshfl [vmem:[#allocation1 + $0x38] sm:$0xff pattern:$0x75316420]
        %vm242 = vcmask 1043456
        %v243 = vsel %vm242, %v226, 0.0
        %v244 = vrot.slane %v243, 4
        %v245 = vadd.f32 %v243, %v244
        %v246 = vrot.slane %v245, 2
        %v247 = vadd.f32 %v245, %v246
        %v248 = vrot.slane %v247, 1
        %v249 = vadd.f32 %v247, %v248
        %v250 = vsel %vm242, %v227, 0.0
        %v251 = vrot.slane %v250, 4
        %v252 = vadd.f32 %v250, %v251
        %v253 = vrot.slane %v252, 2
        %v254 = vadd.f32 %v252, %v253
        %v255 = vrot.slane %v254, 1
        %v256 = vadd.f32 %v254, %v255
        %v257 = vsel %vm242, %v228, 0.0
        %v258 = vrot.slane %v257, 4
        %v259 = vadd.f32 %v257, %v258
        %v260 = vrot.slane %v259, 2
        %v261 = vadd.f32 %v259, %v260
        %v262 = vrot.slane %v261, 1
        %v263 = vadd.f32 %v261, %v262
        %v264 = vsel %vm242, %v229, 0.0
        %v265 = vrot.slane %v264, 4
        %v266 = vadd.f32 %v264, %v265
        %v267 = vrot.slane %v266, 2
        %v268 = vadd.f32 %v266, %v267
        %v269 = vrot.slane %v268, 1
        %v270 = vadd.f32 %v268, %v269
        %v271 = vsel %vm242, %v230, 0.0
        %v272 = vrot.slane %v271, 4
        %v273 = vadd.f32 %v271, %v272
        %v274 = vrot.slane %v273, 2
        %v275 = vadd.f32 %v273, %v274
        %v276 = vrot.slane %v275, 1
        %v277 = vadd.f32 %v275, %v276
        %v278 = vsel %vm242, %v231, 0.0
        %v279 = vrot.slane %v278, 4
        %v280 = vadd.f32 %v278, %v279
        %v281 = vrot.slane %v280, 2
        %v282 = vadd.f32 %v280, %v281
        %v283 = vrot.slane %v282, 1
        %v284 = vadd.f32 %v282, %v283
        %v285 = vsel %vm242, %v232, 0.0
        %v286 = vrot.slane %v285, 4
        %v287 = vadd.f32 %v285, %v286
        %v288 = vrot.slane %v287, 2
        %v289 = vadd.f32 %v287, %v288
        %v290 = vrot.slane %v289, 1
        %v291 = vadd.f32 %v289, %v290
        %v292 = vsel %vm242, %v233, 0.0
        %v293 = vrot.slane %v292, 4
        %v294 = vadd.f32 %v292, %v293
        %v295 = vrot.slane %v294, 2
        %v296 = vadd.f32 %v294, %v295
        %v297 = vrot.slane %v296, 1
        %v298 = vadd.f32 %v296, %v297
        %s299 = sld [smem:[#allocation2]]
        %v300 = vstv %s299
        %v301 = vmul.f32 %v249, %v300
        %v302 = vmul.f32 %v256, %v300
        %v303 = vmul.f32 %v263, %v300
        %v304 = vmul.f32 %v270, %v300
        %v305 = vmul.f32 %v277, %v300
        %v306 = vmul.f32 %v284, %v300
        %v307 = vmul.f32 %v291, %v300
        %v308 = vmul.f32 %v298, %v300
        %s309 = sld [smem:[#allocation3]]
        %v310 = vstv %s309
        %v311 = vadd.f32 %v301, %v310
        %v312 = vadd.f32 %v302, %v310
        %v313 = vadd.f32 %v303, %v310
        %v314 = vadd.f32 %v304, %v310
        %v315 = vadd.f32 %v305, %v310
        %v316 = vadd.f32 %v306, %v310
        %v317 = vadd.f32 %v307, %v310
        %v318 = vadd.f32 %v308, %v310
        %v319 = vxor.u32 %v311, 2147483648
        %v320 = vxor.u32 %v312, 2147483648
        %v321 = vxor.u32 %v313, 2147483648
        %v322 = vxor.u32 %v314, 2147483648
        %v323 = vxor.u32 %v315, 2147483648
        %v324 = vxor.u32 %v316, 2147483648
        %v325 = vxor.u32 %v317, 2147483648
        %v326 = vxor.u32 %v318, 2147483648
        %v327 = vmul.f32 %v319, 1.442695
        %v328 = vpow.pop %v327
        %v329 = vmul.f32 %v320, 1.442695
        %v330 = vpow.pop %v329
        %v331 = vmul.f32 %v321, 1.442695
        %v332 = vpow.pop %v331
        %v333 = vmul.f32 %v322, 1.442695
        %v334 = vpow.pop %v333
        %v335 = vmul.f32 %v323, 1.442695
        %v336 = vpow.pop %v335
        %v337 = vmul.f32 %v324, 1.442695
        %v338 = vpow.pop %v337
        %v339 = vmul.f32 %v325, 1.442695
        %v340 = vpow.pop %v339
        %v341 = vmul.f32 %v326, 1.442695
        %v342 = vpow.pop %v341
        %v343 = vadd.f32 %v328, 1.0
        %v344 = vadd.f32 %v330, 1.0
        %v345 = vadd.f32 %v332, 1.0
        %v346 = vadd.f32 %v334, 1.0
        %v347 = vadd.f32 %v336, 1.0
        %v348 = vadd.f32 %v338, 1.0
        %v349 = vadd.f32 %v340, 1.0
        %v350 = vadd.f32 %v342, 1.0
        %v351 = vrcp.pop %v343
        %v352 = vmul.f32 %v343, %v351
        %v353 = vsub.f32 1.0, %v352
        %v354 = vmul.f32 %v351, %v353
        %v355 = vadd.f32 %v351, %v354
        %vm356 = vweird.f32 %v343
        %vm357 = vweird.f32 %v351
        %vm358 = vmor %vm356, %vm357
        %v359 = vsel %vm358, %v351, %v355
        %v360 = vand.u32 2147483647, %v343
        %vm361 = vcmp.eq.f32.partialorder %v360, 8.507059e+37
        %v362 = vand.u32 %v343, 2147483648
        %v363 = vor.u32 1.1754944e-38, %v362
        %v364 = vsel %vm361, %v363, %v359
        %v365 = vmul.f32 1.0, %v364
        %v366 = vrcp.pop %v344
        %v367 = vmul.f32 %v344, %v366
        %v368 = vsub.f32 1.0, %v367
        %v369 = vmul.f32 %v366, %v368
        %v370 = vadd.f32 %v366, %v369
        %vm371 = vweird.f32 %v344
        %vm372 = vweird.f32 %v366
        %vm373 = vmor %vm371, %vm372
        %v374 = vsel %vm373, %v366, %v370
        %v375 = vand.u32 2147483647, %v344
        %vm376 = vcmp.eq.f32.partialorder %v375, 8.507059e+37
        %v377 = vand.u32 %v344, 2147483648
        %v378 = vor.u32 1.1754944e-38, %v377
        %v379 = vsel %vm376, %v378, %v374
        %v380 = vmul.f32 1.0, %v379
        %v381 = vrcp.pop %v345
        %v382 = vmul.f32 %v345, %v381
        %v383 = vsub.f32 1.0, %v382
        %v384 = vmul.f32 %v381, %v383
        %v385 = vadd.f32 %v381, %v384
        %vm386 = vweird.f32 %v345
        %vm387 = vweird.f32 %v381
        %vm388 = vmor %vm386, %vm387
        %v389 = vsel %vm388, %v381, %v385
        %v390 = vand.u32 2147483647, %v345
        %vm391 = vcmp.eq.f32.partialorder %v390, 8.507059e+37
        %v392 = vand.u32 %v345, 2147483648
        %v393 = vor.u32 1.1754944e-38, %v392
        %v394 = vsel %vm391, %v393, %v389
        %v395 = vmul.f32 1.0, %v394
        %v396 = vrcp.pop %v346
        %v397 = vmul.f32 %v346, %v396
        %v398 = vsub.f32 1.0, %v397
        %v399 = vmul.f32 %v396, %v398
        %v400 = vadd.f32 %v396, %v399
        %vm401 = vweird.f32 %v346
        %vm402 = vweird.f32 %v396
        %vm403 = vmor %vm401, %vm402
        %v404 = vsel %vm403, %v396, %v400
        %v405 = vand.u32 2147483647, %v346
        %vm406 = vcmp.eq.f32.partialorder %v405, 8.507059e+37
        %v407 = vand.u32 %v346, 2147483648
        %v408 = vor.u32 1.1754944e-38, %v407
        %v409 = vsel %vm406, %v408, %v404
        %v410 = vmul.f32 1.0, %v409
        %v411 = vrcp.pop %v347
        %v412 = vmul.f32 %v347, %v411
        %v413 = vsub.f32 1.0, %v412
        %v414 = vmul.f32 %v411, %v413
        %v415 = vadd.f32 %v411, %v414
        %vm416 = vweird.f32 %v347
        %vm417 = vweird.f32 %v411
        %vm418 = vmor %vm416, %vm417
        %v419 = vsel %vm418, %v411, %v415
        %v420 = vand.u32 2147483647, %v347
        %vm421 = vcmp.eq.f32.partialorder %v420, 8.507059e+37
        %v422 = vand.u32 %v347, 2147483648
        %v423 = vor.u32 1.1754944e-38, %v422
        %v424 = vsel %vm421, %v423, %v419
        %v425 = vmul.f32 1.0, %v424
        %v426 = vrcp.pop %v348
        %v427 = vmul.f32 %v348, %v426
        %v428 = vsub.f32 1.0, %v427
        %v429 = vmul.f32 %v426, %v428
        %v430 = vadd.f32 %v426, %v429
        %vm431 = vweird.f32 %v348
        %vm432 = vweird.f32 %v426
        %vm433 = vmor %vm431, %vm432
        %v434 = vsel %vm433, %v426, %v430
        %v435 = vand.u32 2147483647, %v348
        %vm436 = vcmp.eq.f32.partialorder %v435, 8.507059e+37
        %v437 = vand.u32 %v348, 2147483648
        %v438 = vor.u32 1.1754944e-38, %v437
        %v439 = vsel %vm436, %v438, %v434
        %v440 = vmul.f32 1.0, %v439
        %v441 = vrcp.pop %v349
        %v442 = vmul.f32 %v349, %v441
        %v443 = vsub.f32 1.0, %v442
        %v444 = vmul.f32 %v441, %v443
        %v445 = vadd.f32 %v441, %v444
        %vm446 = vweird.f32 %v349
        %vm447 = vweird.f32 %v441
        %vm448 = vmor %vm446, %vm447
        %v449 = vsel %vm448, %v441, %v445
        %v450 = vand.u32 2147483647, %v349
        %vm451 = vcmp.eq.f32.partialorder %v450, 8.507059e+37
        %v452 = vand.u32 %v349, 2147483648
        %v453 = vor.u32 1.1754944e-38, %v452
        %v454 = vsel %vm451, %v453, %v449
        %v455 = vmul.f32 1.0, %v454
        %v456 = vrcp.pop %v350
        %v457 = vmul.f32 %v350, %v456
        %v458 = vsub.f32 1.0, %v457
        %v459 = vmul.f32 %v456, %v458
        %v460 = vadd.f32 %v456, %v459
        %vm461 = vweird.f32 %v350
        %vm462 = vweird.f32 %v456
        %vm463 = vmor %vm461, %vm462
        %v464 = vsel %vm463, %v456, %v460
        %v465 = vand.u32 2147483647, %v350
        %vm466 = vcmp.eq.f32.partialorder %v465, 8.507059e+37
        %v467 = vand.u32 %v350, 2147483648
        %v468 = vor.u32 1.1754944e-38, %v467
        %v469 = vsel %vm466, %v468, %v464
        %v470 = vmul.f32 1.0, %v469
        %v479 = vrot.slane %v380, 4
        %v480 = vrot.slane %v410, 4
        %v481 = vrot.slane %v440, 4
        %v482 = vrot.slane %v470, 4
        %v483 = vsel %vm242, %v365, %v479
        %v484 = vsel %vm242, %v395, %v480
        %v485 = vsel %vm242, %v425, %v481
        %v486 = vsel %vm242, %v455, %v482
        %v491 = vmul.f32 %v211, %v483
        %v492 = vmul.f32 %v212, %v484
        %v493 = vmul.f32 %v213, %v485
        %v494 = vmul.f32 %v214, %v486
        %495 = vst [vmem:[%s208] sm:$0xff] %v491
        %496 = vst [vmem:[%s208 + $0x8] sm:$0xff] %v492
        %497 = vst [vmem:[%s208 + $0x10] sm:$0xff] %v493
        %498 = vst [vmem:[%s208 + $0x18] sm:$0xff] %v494
        %s499 = sand.u32 %s114, 1
        %s500 = scalar_lea.sflag [#allocation6], %s499
        %s501 = sand.u32 %s114, 1
        %s502 = smul.addr %s501, 32
        %s503 = scalar_lea.vmem [#allocation7], %s502
        // Predicated region
        $region37: #{tpu_custom_call.1} parent=31 // pred_check
          %p504 = pneg %p124
        $region38: #{tpu_custom_call.1} parent=31 // pred_check_branch
          %506 = sbr.rel (%p504) target = $region40
        $region39: #{tpu_custom_call.1} parent=31 // pred_region
          %s507 = smul.u32 8, %s27
          %509 = vsyncadd %s500, 0
          %s510 = smul.addr %s26, 8
          %s511 = sadd.s32 %s507, %s510
          %s512 = smul.addr %s511, 4
          %s513 = scalar_lea.hbm %s3, %s512
          %s515 = sshll.u32 %s503, 4
          %s516 = int_to_ptr.vmem [resolvable:$true] %s515
          %s517 = sshll.u32 %s513, 4
          %s518 = int_to_ptr.hbm [resolvable:$true] %s517
          %520 = dma.vmem_to_hbm [thread:$0]  %s516, 512, %s518, %s500
        $region40: #{tpu_custom_call.1} parent=31 // pred_fallthru
          _
      $region32: #{tpu_custom_call.1} parent=5 // pred_fallthru
        _
      %p521 = scmp.le.s32.totalorder 2, %s17
      // Predicated region
      $region41: #{tpu_custom_call.1} parent=5 // pred_check
        %p522 = pneg %p521
      $region42: #{tpu_custom_call.1} parent=5 // pred_check_branch
        %524 = sbr.rel (%p522) target = $region44
      $region43: #{tpu_custom_call.1} parent=5 // pred_region
        %s525 = ssub.s32 %s17, 2
        // Predicated region
        $region45: #{tpu_custom_call.1} parent=43 // pred_check
          %p526 = pneg %p130
        $region46: #{tpu_custom_call.1} parent=43 // pred_check_branch
          %528 = sbr.rel (%p526) target = $region48
        $region47: #{tpu_custom_call.1} parent=43 // pred_region
          %s529 = sand.u32 %s115, 1
          %s530 = scalar_lea.sflag [#allocation6], %s529
          %s531 = sand.u32 %s115, 1
          %s532 = smul.addr %s531, 32
          %s533 = scalar_lea.vmem [#allocation7], %s532
          %535 = dma.done %s530, 512
        $region48: #{tpu_custom_call.1} parent=43 // pred_fallthru
          _
      $region44: #{tpu_custom_call.1} parent=5 // pred_fallthru
        _
    $region6: #{tpu_custom_call.1} parent=1 // loop_footer
      %s21 = sadd.s32 1, %s17
    $region7: #{tpu_custom_call.1} parent=1 // loop_footer_branch
      %16 = sbr.rel target = $region3
    $region8: #{tpu_custom_call.1} parent=1 // loop_exit
      _
    %536 = vsyncpa [#allocation5], 1
    %s537 = scalar_lea.sflag [#allocation5], 1
    %538 = vsyncpa %s537, 1
    %539 = vsyncpa [#allocation6], 1
    %s540 = scalar_lea.sflag [#allocation6], 1
    %541 = vsyncpa %s540, 1

</llo_original>
